<compile_context>
chip_gen: v7x
topology: tpu7x:2x2x1
jax: 0.10.0
libtpu: 0.0.40
codegen_flags: <defaults>
</compile_context>

<pallas_src>
import functools

import numpy as np
import jax
import jax.numpy as jnp
from jax.experimental import pallas as pl
from jax.experimental.pallas import tpu as pltpu


def _fused_dr_kernel(x_ref, w1_ref, b1_ref, w2_ref, b2_ref, mask_ref, out_ref,
                     *, width, stack1, stack2):
    """Fused ConvBR -> ConvBR on one image.

    x_ref   : (1, Cin, HW)   input image, NCHW flattened over (H, W)
    w1_ref  : stacked: (C1, 9*Cin)   | tap-major: (9*C1, Cin)   (BN scale folded)
    b1_ref  : (C1, 1)        conv1 folded BN bias
    w2_ref  : stacked: (C2, 9*C1)    | tap-major: (9*C2, C1)    (BN scale folded)
    b2_ref  : (C2, 1)        conv2 folded BN bias
    mask_ref: (9, HW)        per-tap 0/1 validity mask (realizes zero padding)
    out_ref : (1, C2, HW)    output image, NCHW flattened over (H, W)
    """
    hw = x_ref.shape[2]
    x = x_ref[0].astype(jnp.float32)             # (Cin, HW) lane-dense load
    masks = mask_ref[...]                         # (9, HW)

    def tap(src, kh, kw):
        """Rolled + zero-pad-masked view of `src` for 3x3 tap (kh, kw)."""
        t = kh * 3 + kw
        # output pixel p reads input pixel p + s_rel (when in range).
        s_rel = (kh - 1) * width + (kw - 1)
        sh = (-s_rel) % hw                        # static non-negative roll
        patch = pltpu.roll(src, sh, axis=1) if sh else src
        if t != 4:                                # center tap is always valid
            patch = patch * masks[t:t + 1, :]     # zero out-of-range taps
        return patch

    def conv_stacked(src, w, bias):
        """One MXU matmul per layer: contract over (tap, cin) at once."""
        stacked = jnp.concatenate(
            [tap(src, kh, kw) for kh in range(3) for kw in range(3)], axis=0)
        acc = jnp.dot(w, stacked, preferred_element_type=jnp.float32)
        return jnp.maximum(acc + bias, 0.0)       # folded-BN bias + ReLU

    def conv_accum(src, w_taps, bias):
        """9 accumulating dots; only one (Cin, HW) patch live at a time."""
        cout = w_taps.shape[0] // 9
        acc = jnp.zeros((cout, hw), jnp.float32)
        for kh in range(3):
            for kw in range(3):
                t = kh * 3 + kw
                acc += jnp.dot(w_taps[t * cout:(t + 1) * cout, :],
                               tap(src, kh, kw),
                               preferred_element_type=jnp.float32)
        return jnp.maximum(acc + bias, 0.0)       # folded-BN bias + ReLU

    layer1 = conv_stacked if stack1 else conv_accum
    layer2 = conv_stacked if stack2 else conv_accum

    y1 = layer1(x, w1_ref[...], b1_ref[...])      # (C1, HW), stays on-chip
    y2 = layer2(y1, w2_ref[...], b2_ref[...])     # (C2, HW)
    out_ref[0] = y2.astype(out_ref.dtype)         # lane-dense store


def _tap_masks(H, W):
    """(9, H*W) 0/1 mask: mask[t, p]=1 iff tap t of output pixel p is in-bounds."""
    hh, ww = np.meshgrid(np.arange(H), np.arange(W), indexing="ij")
    rows = []
    for kh in range(3):
        for kw in range(3):
            ih, iw = hh + kh - 1, ww + kw - 1
            valid = (ih >= 0) & (ih < H) & (iw >= 0) & (iw < W)
            rows.append(valid.reshape(-1))
    return jnp.asarray(np.stack(rows), dtype=jnp.float32)


def _use_stacked(cin, hw):
    """Static decision: single tap-stacked matmul vs. 9 accumulating dots."""
    return (9 * cin) <= 256 and (9 * cin * hw * 4) <= (2 << 20)


def _fold_weight_stacked(w_hwio, bn_scale):
    """(3,3,Cin,Cout) HWIO * BN scale -> (Cout, 9*Cin), column = t*Cin + cin."""
    w = w_hwio.astype(jnp.float32) * bn_scale.astype(jnp.float32)[None, None, None, :]
    w = jnp.transpose(w, (3, 0, 1, 2))            # (Cout, 3, 3, Cin)
    return w.reshape(w.shape[0], -1)              # (Cout, 9*Cin)


def _fold_weight_tapmajor(w_hwio, bn_scale):
    """(3,3,Cin,Cout) HWIO * BN scale -> (9*Cout, Cin), row = t*Cout + cout."""
    w = w_hwio.astype(jnp.float32) * bn_scale.astype(jnp.float32)[None, None, None, :]
    w = jnp.transpose(w, (0, 1, 3, 2))            # (3, 3, Cout, Cin)
    return w.reshape(9 * w.shape[2], w.shape[3])  # (9*Cout, Cin)


@jax.jit
def dimensional_reduction(x_nchw, params):
    """Forward of DimensionalReduction. Input/output NCHW like PyTorch."""
    N, Cin, H, W = x_nchw.shape
    C1 = params["w1"].shape[-1]
    C2 = params["w2"].shape[-1]
    HW = H * W

    stack1 = _use_stacked(Cin, HW)
    stack2 = _use_stacked(C1, HW)

    x_flat = x_nchw.reshape(N, Cin, HW).astype(jnp.float32)   # free view
    fold1 = _fold_weight_stacked if stack1 else _fold_weight_tapmajor
    fold2 = _fold_weight_stacked if stack2 else _fold_weight_tapmajor
    w1 = fold1(params["w1"], params["scale1"])
    w2 = fold2(params["w2"], params["scale2"])
    b1 = params["bias1"].reshape(C1, 1).astype(jnp.float32)
    b2 = params["bias2"].reshape(C2, 1).astype(jnp.float32)
    masks = _tap_masks(H, W)

    out = pl.pallas_call(
        functools.partial(_fused_dr_kernel, width=W, stack1=stack1,
                          stack2=stack2),
        out_shape=jax.ShapeDtypeStruct((N, C2, HW), jnp.float32),
        grid_spec=pltpu.PrefetchScalarGridSpec(
            num_scalar_prefetch=0,
            grid=(N,),
            in_specs=[
                pl.BlockSpec((1, Cin, HW), lambda n: (n, 0, 0)),
                pl.BlockSpec(w1.shape, lambda n: (0, 0)),
                pl.BlockSpec((C1, 1), lambda n: (0, 0)),
                pl.BlockSpec(w2.shape, lambda n: (0, 0)),
                pl.BlockSpec((C2, 1), lambda n: (0, 0)),
                pl.BlockSpec((9, HW), lambda n: (0, 0)),
            ],
            out_specs=pl.BlockSpec((1, C2, HW), lambda n: (n, 0, 0)),
        ),
        compiler_params=pltpu.CompilerParams(
            dimension_semantics=("parallel",)),
    )(x_flat, w1, b1, w2, b2, masks)

    return out.reshape(N, C2, H, W)               # free view back to NCHW


def init_params(key, in_channel, out_channel):
    """Deterministic init matching the module's __init__ shapes.

    Conv weights: kaiming_normal_(a=1) -> std = 1/sqrt(fan_in), fan_in = Cin*3*3.
    BN (default init, eval stats): gamma=1, beta=0, mean=0, var=1, eps=1e-5.
    """
    k1, k2 = jax.random.split(key)
    eps = 1e-5

    def kaiming(k, cin, cout):
        std = 1.0 / jnp.sqrt(jnp.float32(cin * 3 * 3))  # gain(leaky_relu, a=1)=1
        return jax.random.normal(k, (3, 3, cin, cout), dtype=jnp.float32) * std

    def bn_fold(cout):
        gamma = jnp.ones((cout,), jnp.float32)
        beta = jnp.zeros((cout,), jnp.float32)
        mean = jnp.zeros((cout,), jnp.float32)
        var = jnp.ones((cout,), jnp.float32)
        scale = gamma / jnp.sqrt(var + eps)
        bias = beta - mean * scale
        return scale, bias

    s1, b1 = bn_fold(out_channel)
    s2, b2 = bn_fold(out_channel)
    return {
        "w1": kaiming(k1, in_channel, out_channel),
        "scale1": s1, "bias1": b1,
        "w2": kaiming(k2, out_channel, out_channel),
        "scale2": s2, "bias2": b2,
    }


def _reference(x_nchw, params):
    """Pure-JAX reference (lax conv) for correctness checking."""
    x = jnp.transpose(x_nchw, (0, 2, 3, 1))

    def layer(x, w, scale, bias):
        y = jax.lax.conv_general_dilated(
            x, w, window_strides=(1, 1), padding=((1, 1), (1, 1)),
            dimension_numbers=("NHWC", "HWIO", "NHWC"))
        y = y * scale[None, None, None, :] + bias[None, None, None, :]
        return jnp.maximum(y, 0.0)

    x = layer(x, params["w1"], params["scale1"], params["bias1"])
    x = layer(x, params["w2"], params["scale2"], params["bias2"])
    return jnp.transpose(x, (0, 3, 1, 2))


if __name__ == "__main__":
    key = jax.random.PRNGKey(0)
    k_x, k_p = jax.random.split(key)

    N, Cin, H, W = 2, 4, 16, 16
    Cout = 8

    x = jax.random.normal(k_x, (N, Cin, H, W), dtype=jnp.float32)
    params = init_params(k_p, Cin, Cout)

    out = dimensional_reduction(x, params)
    out = jax.block_until_ready(out)

    ref = jax.block_until_ready(_reference(x, params))
    assert out.shape == (N, Cout, H, W)
    assert jnp.allclose(out, ref, atol=1e-4, rtol=1e-4), "mismatch vs reference"

    print("KERNEL_OK")
</pallas_src>

<mosaic_0001>
module attributes {stable_mosaic.version = 11 : i64} {
  func.func @_fused_dr_kernel(%arg0: i32, %arg1: memref<1x4x256xf32, #tpu.memory_space<vmem>>, %arg2: memref<8x36xf32, #tpu.memory_space<vmem>>, %arg3: memref<8x1xf32, #tpu.memory_space<vmem>>, %arg4: memref<8x72xf32, #tpu.memory_space<vmem>>, %arg5: memref<8x1xf32, #tpu.memory_space<vmem>>, %arg6: memref<9x256xf32, #tpu.memory_space<vmem>>, %arg7: memref<1x8x256xf32, #tpu.memory_space<vmem>>) attributes {dimension_semantics = [#tpu.dimension_semantics<parallel>], iteration_bounds = array<i64: 2>, scalar_prefetch = 0 : i64, scratch_operands = 0 : i64, tpu.core_type = #tpu.core_type<tc>, window_params = [{transform_indices = @transform_0, window_bounds = array<i64: 1, 4, 256>}, {pipeline_mode = #tpu.pipeline_mode<synchronous>, transform_indices = @transform_1, window_bounds = array<i64: 8, 36>}, {pipeline_mode = #tpu.pipeline_mode<synchronous>, transform_indices = @transform_2, window_bounds = array<i64: 8, 1>}, {pipeline_mode = #tpu.pipeline_mode<synchronous>, transform_indices = @transform_3, window_bounds = array<i64: 8, 72>}, {pipeline_mode = #tpu.pipeline_mode<synchronous>, transform_indices = @transform_4, window_bounds = array<i64: 8, 1>}, {pipeline_mode = #tpu.pipeline_mode<synchronous>, transform_indices = @transform_5, window_bounds = array<i64: 9, 256>}, {transform_indices = @transform_6, window_bounds = array<i64: 1, 8, 256>}]} {
    %c0 = arith.constant 0 : index
    %c0_0 = arith.constant 0 : index
    %c0_1 = arith.constant 0 : index
    %0 = vector.load %arg1[%c0, %c0_0, %c0_1] : memref<1x4x256xf32, #tpu.memory_space<vmem>>, vector<1x4x256xf32>
    %1 = vector.shape_cast %0 : vector<1x4x256xf32> to vector<4x256xf32>
    %c0_2 = arith.constant 0 : index
    %c0_3 = arith.constant 0 : index
    %2 = vector.load %arg6[%c0_2, %c0_3] : memref<9x256xf32, #tpu.memory_space<vmem>>, vector<9x256xf32>
    %c0_4 = arith.constant 0 : index
    %c0_5 = arith.constant 0 : index
    %3 = vector.load %arg2[%c0_4, %c0_5] : memref<8x36xf32, #tpu.memory_space<vmem>>, vector<8x36xf32>
    %c0_6 = arith.constant 0 : index
    %c0_7 = arith.constant 0 : index
    %4 = vector.load %arg3[%c0_6, %c0_7] : memref<8x1xf32, #tpu.memory_space<vmem>>, vector<8x1xf32>
    %c17_i32 = arith.constant 17 : i32
    %5 = tpu.dynamic_rotate %1 by %c17_i32 dim 1 : vector<4x256xf32>, i32 -> vector<4x256xf32>
    %6 = vector.extract_strided_slice %2 {offsets = [0, 0], sizes = [1, 256], strides = [1, 1]} : vector<9x256xf32> to vector<1x256xf32>
    %7 = vector.broadcast %6 : vector<1x256xf32> to vector<4x256xf32>
    %8 = arith.mulf %5, %7 : vector<4x256xf32>
    %c16_i32 = arith.constant 16 : i32
    %9 = tpu.dynamic_rotate %1 by %c16_i32 dim 1 : vector<4x256xf32>, i32 -> vector<4x256xf32>
    %10 = vector.extract_strided_slice %2 {offsets = [1, 0], sizes = [1, 256], strides = [1, 1]} : vector<9x256xf32> to vector<1x256xf32>
    %11 = vector.broadcast %10 : vector<1x256xf32> to vector<4x256xf32>
    %12 = arith.mulf %9, %11 : vector<4x256xf32>
    %c15_i32 = arith.constant 15 : i32
    %13 = tpu.dynamic_rotate %1 by %c15_i32 dim 1 : vector<4x256xf32>, i32 -> vector<4x256xf32>
    %14 = vector.extract_strided_slice %2 {offsets = [2, 0], sizes = [1, 256], strides = [1, 1]} : vector<9x256xf32> to vector<1x256xf32>
    %15 = vector.broadcast %14 : vector<1x256xf32> to vector<4x256xf32>
    %16 = arith.mulf %13, %15 : vector<4x256xf32>
    %c1_i32 = arith.constant 1 : i32
    %17 = tpu.dynamic_rotate %1 by %c1_i32 dim 1 : vector<4x256xf32>, i32 -> vector<4x256xf32>
    %18 = vector.extract_strided_slice %2 {offsets = [3, 0], sizes = [1, 256], strides = [1, 1]} : vector<9x256xf32> to vector<1x256xf32>
    %19 = vector.broadcast %18 : vector<1x256xf32> to vector<4x256xf32>
    %20 = arith.mulf %17, %19 : vector<4x256xf32>
    %c255_i32 = arith.constant 255 : i32
    %21 = tpu.dynamic_rotate %1 by %c255_i32 dim 1 : vector<4x256xf32>, i32 -> vector<4x256xf32>
    %22 = vector.extract_strided_slice %2 {offsets = [5, 0], sizes = [1, 256], strides = [1, 1]} : vector<9x256xf32> to vector<1x256xf32>
    %23 = vector.broadcast %22 : vector<1x256xf32> to vector<4x256xf32>
    %24 = arith.mulf %21, %23 : vector<4x256xf32>
    %c241_i32 = arith.constant 241 : i32
    %25 = tpu.dynamic_rotate %1 by %c241_i32 dim 1 : vector<4x256xf32>, i32 -> vector<4x256xf32>
    %26 = vector.extract_strided_slice %2 {offsets = [6, 0], sizes = [1, 256], strides = [1, 1]} : vector<9x256xf32> to vector<1x256xf32>
    %27 = vector.broadcast %26 : vector<1x256xf32> to vector<4x256xf32>
    %28 = arith.mulf %25, %27 : vector<4x256xf32>
    %c240_i32 = arith.constant 240 : i32
    %29 = tpu.dynamic_rotate %1 by %c240_i32 dim 1 : vector<4x256xf32>, i32 -> vector<4x256xf32>
    %30 = vector.extract_strided_slice %2 {offsets = [7, 0], sizes = [1, 256], strides = [1, 1]} : vector<9x256xf32> to vector<1x256xf32>
    %31 = vector.broadcast %30 : vector<1x256xf32> to vector<4x256xf32>
    %32 = arith.mulf %29, %31 : vector<4x256xf32>
    %c239_i32 = arith.constant 239 : i32
    %33 = tpu.dynamic_rotate %1 by %c239_i32 dim 1 : vector<4x256xf32>, i32 -> vector<4x256xf32>
    %34 = vector.extract_strided_slice %2 {offsets = [8, 0], sizes = [1, 256], strides = [1, 1]} : vector<9x256xf32> to vector<1x256xf32>
    %35 = vector.broadcast %34 : vector<1x256xf32> to vector<4x256xf32>
    %36 = arith.mulf %33, %35 : vector<4x256xf32>
    %37 = tpu.concatenate %8, %12, %16, %20, %1, %24, %28, %32, %36 in 0 : vector<4x256xf32>, vector<4x256xf32>, vector<4x256xf32>, vector<4x256xf32>, vector<4x256xf32>, vector<4x256xf32>, vector<4x256xf32>, vector<4x256xf32>, vector<4x256xf32> -> vector<36x256xf32>
    %cst = arith.constant dense<0.000000e+00> : vector<8x256xf32>
    %38 = tpu.matmul %3, %37, %cst {dimension_numbers = #tpu.dot_dimension_numbers<[1], [0], [0], [1], [0, 0, 1, 1], [], []>} : vector<8x36xf32>, vector<36x256xf32>, vector<8x256xf32> -> vector<8x256xf32>
    %39 = vector.broadcast %4 : vector<8x1xf32> to vector<8x256xf32>
    %40 = arith.addf %38, %39 : vector<8x256xf32>
    %cst_8 = arith.constant 0.000000e+00 : f32
    %41 = vector.broadcast %cst_8 : f32 to vector<8x256xf32>
    %42 = arith.maximumf %40, %41 : vector<8x256xf32>
    %c0_9 = arith.constant 0 : index
    %c0_10 = arith.constant 0 : index
    %43 = vector.load %arg4[%c0_9, %c0_10] : memref<8x72xf32, #tpu.memory_space<vmem>>, vector<8x72xf32>
    %c0_11 = arith.constant 0 : index
    %c0_12 = arith.constant 0 : index
    %44 = vector.load %arg5[%c0_11, %c0_12] : memref<8x1xf32, #tpu.memory_space<vmem>>, vector<8x1xf32>
    %c17_i32_13 = arith.constant 17 : i32
    %45 = tpu.dynamic_rotate %42 by %c17_i32_13 dim 1 : vector<8x256xf32>, i32 -> vector<8x256xf32>
    %46 = vector.extract_strided_slice %2 {offsets = [0, 0], sizes = [1, 256], strides = [1, 1]} : vector<9x256xf32> to vector<1x256xf32>
    %47 = vector.broadcast %46 : vector<1x256xf32> to vector<8x256xf32>
    %48 = arith.mulf %45, %47 : vector<8x256xf32>
    %c16_i32_14 = arith.constant 16 : i32
    %49 = tpu.dynamic_rotate %42 by %c16_i32_14 dim 1 : vector<8x256xf32>, i32 -> vector<8x256xf32>
    %50 = vector.extract_strided_slice %2 {offsets = [1, 0], sizes = [1, 256], strides = [1, 1]} : vector<9x256xf32> to vector<1x256xf32>
    %51 = vector.broadcast %50 : vector<1x256xf32> to vector<8x256xf32>
    %52 = arith.mulf %49, %51 : vector<8x256xf32>
    %c15_i32_15 = arith.constant 15 : i32
    %53 = tpu.dynamic_rotate %42 by %c15_i32_15 dim 1 : vector<8x256xf32>, i32 -> vector<8x256xf32>
    %54 = vector.extract_strided_slice %2 {offsets = [2, 0], sizes = [1, 256], strides = [1, 1]} : vector<9x256xf32> to vector<1x256xf32>
    %55 = vector.broadcast %54 : vector<1x256xf32> to vector<8x256xf32>
    %56 = arith.mulf %53, %55 : vector<8x256xf32>
    %c1_i32_16 = arith.constant 1 : i32
    %57 = tpu.dynamic_rotate %42 by %c1_i32_16 dim 1 : vector<8x256xf32>, i32 -> vector<8x256xf32>
    %58 = vector.extract_strided_slice %2 {offsets = [3, 0], sizes = [1, 256], strides = [1, 1]} : vector<9x256xf32> to vector<1x256xf32>
    %59 = vector.broadcast %58 : vector<1x256xf32> to vector<8x256xf32>
    %60 = arith.mulf %57, %59 : vector<8x256xf32>
    %c255_i32_17 = arith.constant 255 : i32
    %61 = tpu.dynamic_rotate %42 by %c255_i32_17 dim 1 : vector<8x256xf32>, i32 -> vector<8x256xf32>
    %62 = vector.extract_strided_slice %2 {offsets = [5, 0], sizes = [1, 256], strides = [1, 1]} : vector<9x256xf32> to vector<1x256xf32>
    %63 = vector.broadcast %62 : vector<1x256xf32> to vector<8x256xf32>
    %64 = arith.mulf %61, %63 : vector<8x256xf32>
    %c241_i32_18 = arith.constant 241 : i32
    %65 = tpu.dynamic_rotate %42 by %c241_i32_18 dim 1 : vector<8x256xf32>, i32 -> vector<8x256xf32>
    %66 = vector.extract_strided_slice %2 {offsets = [6, 0], sizes = [1, 256], strides = [1, 1]} : vector<9x256xf32> to vector<1x256xf32>
    %67 = vector.broadcast %66 : vector<1x256xf32> to vector<8x256xf32>
    %68 = arith.mulf %65, %67 : vector<8x256xf32>
    %c240_i32_19 = arith.constant 240 : i32
    %69 = tpu.dynamic_rotate %42 by %c240_i32_19 dim 1 : vector<8x256xf32>, i32 -> vector<8x256xf32>
    %70 = vector.extract_strided_slice %2 {offsets = [7, 0], sizes = [1, 256], strides = [1, 1]} : vector<9x256xf32> to vector<1x256xf32>
    %71 = vector.broadcast %70 : vector<1x256xf32> to vector<8x256xf32>
    %72 = arith.mulf %69, %71 : vector<8x256xf32>
    %c239_i32_20 = arith.constant 239 : i32
    %73 = tpu.dynamic_rotate %42 by %c239_i32_20 dim 1 : vector<8x256xf32>, i32 -> vector<8x256xf32>
    %74 = vector.extract_strided_slice %2 {offsets = [8, 0], sizes = [1, 256], strides = [1, 1]} : vector<9x256xf32> to vector<1x256xf32>
    %75 = vector.broadcast %74 : vector<1x256xf32> to vector<8x256xf32>
    %76 = arith.mulf %73, %75 : vector<8x256xf32>
    %77 = tpu.concatenate %48, %52, %56, %60, %42, %64, %68, %72, %76 in 0 : vector<8x256xf32>, vector<8x256xf32>, vector<8x256xf32>, vector<8x256xf32>, vector<8x256xf32>, vector<8x256xf32>, vector<8x256xf32>, vector<8x256xf32>, vector<8x256xf32> -> vector<72x256xf32>
    %cst_21 = arith.constant dense<0.000000e+00> : vector<8x256xf32>
    %78 = tpu.matmul %43, %77, %cst_21 {dimension_numbers = #tpu.dot_dimension_numbers<[1], [0], [0], [1], [0, 0, 1, 1], [], []>} : vector<8x72xf32>, vector<72x256xf32>, vector<8x256xf32> -> vector<8x256xf32>
    %79 = vector.broadcast %44 : vector<8x1xf32> to vector<8x256xf32>
    %80 = arith.addf %78, %79 : vector<8x256xf32>
    %cst_22 = arith.constant 0.000000e+00 : f32
    %81 = vector.broadcast %cst_22 : f32 to vector<8x256xf32>
    %82 = arith.maximumf %80, %81 : vector<8x256xf32>
    %c0_23 = arith.constant 0 : index
    %c0_24 = arith.constant 0 : index
    %c0_25 = arith.constant 0 : index
    %83 = vector.load %arg7[%c0_23, %c0_24, %c0_25] : memref<1x8x256xf32, #tpu.memory_space<vmem>>, vector<1x8x256xf32>
    %84 = vector.shape_cast %83 : vector<1x8x256xf32> to vector<8x256xf32>
    %85 = vector.shape_cast %82 : vector<8x256xf32> to vector<1x8x256xf32>
    tpu.vector_store %arg7[%c0_23, %c0_24, %c0_25], %85 {strides = array<i32>} : memref<1x8x256xf32, #tpu.memory_space<vmem>>, vector<1x8x256xf32>,
    return
  }
  func.func @transform_0(%arg0: i32) -> (i32, i32, i32) {
    %c0_i32 = arith.constant 0 : i32
    %c0_i32_0 = arith.constant 0 : i32
    %c0_i32_1 = arith.constant 0 : i32
    return %arg0, %c0_i32, %c0_i32_0 : i32, i32, i32
  }
  func.func @transform_1(%arg0: i32) -> (i32, i32) {
    %c0_i32 = arith.constant 0 : i32
    %c0_i32_0 = arith.constant 0 : i32
    %c0_i32_1 = arith.constant 0 : i32
    return %c0_i32, %c0_i32_0 : i32, i32
  }
  func.func @transform_2(%arg0: i32) -> (i32, i32) {
    %c0_i32 = arith.constant 0 : i32
    %c0_i32_0 = arith.constant 0 : i32
    %c0_i32_1 = arith.constant 0 : i32
    return %c0_i32, %c0_i32_0 : i32, i32
  }
  func.func @transform_3(%arg0: i32) -> (i32, i32) {
    %c0_i32 = arith.constant 0 : i32
    %c0_i32_0 = arith.constant 0 : i32
    %c0_i32_1 = arith.constant 0 : i32
    return %c0_i32, %c0_i32_0 : i32, i32
  }
  func.func @transform_4(%arg0: i32) -> (i32, i32) {
    %c0_i32 = arith.constant 0 : i32
    %c0_i32_0 = arith.constant 0 : i32
    %c0_i32_1 = arith.constant 0 : i32
    return %c0_i32, %c0_i32_0 : i32, i32
  }
  func.func @transform_5(%arg0: i32) -> (i32, i32) {
    %c0_i32 = arith.constant 0 : i32
    %c0_i32_0 = arith.constant 0 : i32
    %c0_i32_1 = arith.constant 0 : i32
    return %c0_i32, %c0_i32_0 : i32, i32
  }
  func.func @transform_6(%arg0: i32) -> (i32, i32, i32) {
    %c0_i32 = arith.constant 0 : i32
    %c0_i32_0 = arith.constant 0 : i32
    %c0_i32_1 = arith.constant 0 : i32
    return %arg0, %c0_i32, %c0_i32_0 : i32, i32, i32
  }
}

</mosaic_0001>

<llo_original>
// kernel: dimensional_reduction.1
$region0: #{dimensional_reduction.1}
  #allocation0 [shape = 'u32[]', space=smem, size = 0x4, offset = 0x4, fixed_abs, tag = 'smem constant byte address 0x4 - core index']
  #allocation1 [shape = 'u32[144,128]{1,0:T(1,128)}', space=vmem, size = 0x12000, scoped, tag = 'internal scratch']
  %s0 = inlined_call_operand.vmem [shape: f32[2,4,256], index: 0, kind: input, shape index: {}]
  %s1 = inlined_call_operand.vmem [shape: f32[8,36], index: 1, kind: input, shape index: {}]
  %s2 = inlined_call_operand.vmem [shape: f32[8,1], index: 2, kind: input, shape index: {}]
  %s3 = inlined_call_operand.vmem [shape: f32[8,72], index: 3, kind: input, shape index: {}]
  %s4 = inlined_call_operand.vmem [shape: f32[8,1], index: 4, kind: input, shape index: {}]
  %s5 = inlined_call_operand.vmem [shape: f32[9,256], index: 5, kind: input, shape index: {}]
  %s6 = inlined_call_operand.vmem [shape: f32[2,8,256], index: 6, kind: output, shape index: {}]
  %s7 = sld [smem:[#allocation0]]
  $region57: #{dimensional_reduction.1} parent=0
    _
  %s9 = ssub.s32 1, %s7
  %s10 = scalar_select 0, %s9, %s7
  loop: start=0, step=1, limit=4
  $region2: #{dimensional_reduction.1} parent=0 // loop_pre_header
    _
  $region3: #{dimensional_reduction.1} parent=0 // loop_header
    %s12 = sphi 0, %s16
    %p13 = scmp.ge.s32.totalorder %s12, 4
    %s22 = sphi 0, %s24
    %s25 = sphi 0, %s22
    %s26 = sphi 0, %s25
    %s42 = sphi 0, %s26
    %s46 = sphi 0, %s46
    %s48 = sphi 0, %s46
    %s49 = sphi 0, %s48
    %s63 = sphi 0, %s49
    %s67 = sphi 0, %s67
    %s69 = sphi 0, %s67
    %s70 = sphi 0, %s69
    %s84 = sphi 0, %s70
    %s88 = sphi 0, %s88
    %s90 = sphi 0, %s88
    %s91 = sphi 0, %s90
    %s105 = sphi 0, %s91
    %s109 = sphi 0, %s109
    %s111 = sphi 0, %s109
    %s112 = sphi 0, %s111
    %s126 = sphi 0, %s112
    %s130 = sphi 0, %s130
    %s132 = sphi 0, %s130
    %s133 = sphi 0, %s132
    %s147 = sphi 0, %s133
    %s153 = sphi 0, %s155
    %s156 = sphi 0, %s153
    %s157 = sphi 0, %s156
    %s173 = sphi 0, %s157
  $region4: #{dimensional_reduction.1} parent=0 // loop_header_branch
    %15 = sbr.rel (%p13) target = $region8
  $region5: #{dimensional_reduction.1} parent=0 // loop_body
    %s17 = ssub.s32 %s12, 1
    %s18 = ssub.s32 %s12, 2
    %s19 = sadd.s32 %s12, 1
    %s20 = ssub.s32 %s12, %s19
    %p21 = scmp.eq.s32.totalorder %s20, 0
    %s23 = sadd.s32 %s22, 1
    %s24 = scalar_select %p21, %s22, %s23
    %p27 = pneg %p21
    %p28 = scmp.eq.s32.totalorder %s12, 1
    %p29 = por %p27, %p28
    %p30 = scmp.ne.s32.totalorder %s22, %s25
    %p31 = scmp.eq.s32.totalorder %s12, 0
    %p32 = por %p30, %p31
    %p33 = scmp.ne.s32.totalorder %s22, %s25
    %p34 = scmp.eq.s32.totalorder %s17, 1
    %p35 = por %p33, %p34
    %p36 = scmp.ne.s32.totalorder %s25, %s26
    %p37 = scmp.eq.s32.totalorder %s17, 0
    %p38 = por %p36, %p37
    %p39 = scmp.ne.s32.totalorder %s25, %s26
    %p40 = scmp.eq.s32.totalorder %s18, 1
    %p41 = por %p39, %p40
    %p43 = scmp.ne.s32.totalorder %s26, %s42
    %p44 = scmp.eq.s32.totalorder %s18, 0
    %p45 = por %p43, %p44
    %s47 = sadd.s32 %s46, 1
    %p50 = scmp.eq.s32.totalorder %s12, 1
    %p51 = scmp.ne.s32.totalorder %s46, %s48
    %p52 = scmp.eq.s32.totalorder %s12, 0
    %p53 = por %p51, %p52
    %p54 = scmp.ne.s32.totalorder %s46, %s48
    %p55 = scmp.eq.s32.totalorder %s17, 1
    %p56 = por %p54, %p55
    %p57 = scmp.ne.s32.totalorder %s48, %s49
    %p58 = scmp.eq.s32.totalorder %s17, 0
    %p59 = por %p57, %p58
    %p60 = scmp.ne.s32.totalorder %s48, %s49
    %p61 = scmp.eq.s32.totalorder %s18, 1
    %p62 = por %p60, %p61
    %p64 = scmp.ne.s32.totalorder %s49, %s63
    %p65 = scmp.eq.s32.totalorder %s18, 0
    %p66 = por %p64, %p65
    %s68 = sadd.s32 %s67, 1
    %p71 = scmp.eq.s32.totalorder %s12, 1
    %p72 = scmp.ne.s32.totalorder %s67, %s69
    %p73 = scmp.eq.s32.totalorder %s12, 0
    %p74 = por %p72, %p73
    %p75 = scmp.ne.s32.totalorder %s67, %s69
    %p76 = scmp.eq.s32.totalorder %s17, 1
    %p77 = por %p75, %p76
    %p78 = scmp.ne.s32.totalorder %s69, %s70
    %p79 = scmp.eq.s32.totalorder %s17, 0
    %p80 = por %p78, %p79
    %p81 = scmp.ne.s32.totalorder %s69, %s70
    %p82 = scmp.eq.s32.totalorder %s18, 1
    %p83 = por %p81, %p82
    %p85 = scmp.ne.s32.totalorder %s70, %s84
    %p86 = scmp.eq.s32.totalorder %s18, 0
    %p87 = por %p85, %p86
    %s89 = sadd.s32 %s88, 1
    %p92 = scmp.eq.s32.totalorder %s12, 1
    %p93 = scmp.ne.s32.totalorder %s88, %s90
    %p94 = scmp.eq.s32.totalorder %s12, 0
    %p95 = por %p93, %p94
    %p96 = scmp.ne.s32.totalorder %s88, %s90
    %p97 = scmp.eq.s32.totalorder %s17, 1
    %p98 = por %p96, %p97
    %p99 = scmp.ne.s32.totalorder %s90, %s91
    %p100 = scmp.eq.s32.totalorder %s17, 0
    %p101 = por %p99, %p100
    %p102 = scmp.ne.s32.totalorder %s90, %s91
    %p103 = scmp.eq.s32.totalorder %s18, 1
    %p104 = por %p102, %p103
    %p106 = scmp.ne.s32.totalorder %s91, %s105
    %p107 = scmp.eq.s32.totalorder %s18, 0
    %p108 = por %p106, %p107
    %s110 = sadd.s32 %s109, 1
    %p113 = scmp.eq.s32.totalorder %s12, 1
    %p114 = scmp.ne.s32.totalorder %s109, %s111
    %p115 = scmp.eq.s32.totalorder %s12, 0
    %p116 = por %p114, %p115
    %p117 = scmp.ne.s32.totalorder %s109, %s111
    %p118 = scmp.eq.s32.totalorder %s17, 1
    %p119 = por %p117, %p118
    %p120 = scmp.ne.s32.totalorder %s111, %s112
    %p121 = scmp.eq.s32.totalorder %s17, 0
    %p122 = por %p120, %p121
    %p123 = scmp.ne.s32.totalorder %s111, %s112
    %p124 = scmp.eq.s32.totalorder %s18, 1
    %p125 = por %p123, %p124
    %p127 = scmp.ne.s32.totalorder %s112, %s126
    %p128 = scmp.eq.s32.totalorder %s18, 0
    %p129 = por %p127, %p128
    %s131 = sadd.s32 %s130, 1
    %p134 = scmp.eq.s32.totalorder %s12, 1
    %p135 = scmp.ne.s32.totalorder %s130, %s132
    %p136 = scmp.eq.s32.totalorder %s12, 0
    %p137 = por %p135, %p136
    %p138 = scmp.ne.s32.totalorder %s130, %s132
    %p139 = scmp.eq.s32.totalorder %s17, 1
    %p140 = por %p138, %p139
    %p141 = scmp.ne.s32.totalorder %s132, %s133
    %p142 = scmp.eq.s32.totalorder %s17, 0
    %p143 = por %p141, %p142
    %p144 = scmp.ne.s32.totalorder %s132, %s133
    %p145 = scmp.eq.s32.totalorder %s18, 1
    %p146 = por %p144, %p145
    %p148 = scmp.ne.s32.totalorder %s133, %s147
    %p149 = scmp.eq.s32.totalorder %s18, 0
    %p150 = por %p148, %p149
    %s151 = ssub.s32 %s12, %s19
    %p152 = scmp.eq.s32.totalorder %s151, 0
    %s154 = sadd.s32 %s153, 1
    %s155 = scalar_select %p152, %s153, %s154
    %p158 = pneg %p152
    %p159 = scmp.eq.s32.totalorder %s12, 1
    %p160 = por %p158, %p159
    %p161 = scmp.ne.s32.totalorder %s153, %s156
    %p162 = scmp.eq.s32.totalorder %s12, 0
    %p163 = por %p161, %p162
    %p164 = scmp.ne.s32.totalorder %s153, %s156
    %p165 = scmp.eq.s32.totalorder %s17, 1
    %p166 = por %p164, %p165
    %p167 = scmp.ne.s32.totalorder %s156, %s157
    %p168 = scmp.eq.s32.totalorder %s17, 0
    %p169 = por %p167, %p168
    %p170 = scmp.ne.s32.totalorder %s156, %s157
    %p171 = scmp.eq.s32.totalorder %s18, 1
    %p172 = por %p170, %p171
    %p174 = scmp.ne.s32.totalorder %s157, %s173
    %p175 = scmp.eq.s32.totalorder %s18, 0
    %p176 = por %p174, %p175
    %p177 = scmp.le.s32.totalorder 1, %s12
    %p178 = scmp.lt.s32.totalorder %s12, 3
    %p179 = pnand %p177, %p178
    %p180 = pneg %p179
    // Predicated region
    $region9: #{dimensional_reduction.1} parent=5 // pred_check
      _
    $region10: #{dimensional_reduction.1} parent=5 // pred_check_branch
      %182 = sbr.rel (%p179) target = $region12
    $region11: #{dimensional_reduction.1} parent=5 // pred_region
      %s183 = ssub.s32 %s12, 1
      // Predicated region
      $region13: #{dimensional_reduction.1} parent=11 // pred_check
        %p184 = pneg %p59
      $region14: #{dimensional_reduction.1} parent=11 // pred_check_branch
        %186 = sbr.rel (%p184) target = $region16
      $region15: #{dimensional_reduction.1} parent=11 // pred_region
        _
      $region16: #{dimensional_reduction.1} parent=11 // pred_fallthru
        _
      // Predicated region
      $region17: #{dimensional_reduction.1} parent=11 // pred_check
        %p187 = pneg %p80
      $region18: #{dimensional_reduction.1} parent=11 // pred_check_branch
        %189 = sbr.rel (%p187) target = $region20
      $region19: #{dimensional_reduction.1} parent=11 // pred_region
        _
      $region20: #{dimensional_reduction.1} parent=11 // pred_fallthru
        _
      // Predicated region
      $region21: #{dimensional_reduction.1} parent=11 // pred_check
        %p190 = pneg %p101
      $region22: #{dimensional_reduction.1} parent=11 // pred_check_branch
        %192 = sbr.rel (%p190) target = $region24
      $region23: #{dimensional_reduction.1} parent=11 // pred_region
        _
      $region24: #{dimensional_reduction.1} parent=11 // pred_fallthru
        _
      // Predicated region
      $region25: #{dimensional_reduction.1} parent=11 // pred_check
        %p193 = pneg %p122
      $region26: #{dimensional_reduction.1} parent=11 // pred_check_branch
        %195 = sbr.rel (%p193) target = $region28
      $region27: #{dimensional_reduction.1} parent=11 // pred_region
        _
      $region28: #{dimensional_reduction.1} parent=11 // pred_fallthru
        _
      // Predicated region
      $region29: #{dimensional_reduction.1} parent=11 // pred_check
        %p196 = pneg %p143
      $region30: #{dimensional_reduction.1} parent=11 // pred_check_branch
        %198 = sbr.rel (%p196) target = $region32
      $region31: #{dimensional_reduction.1} parent=11 // pred_region
        _
      $region32: #{dimensional_reduction.1} parent=11 // pred_fallthru
        _
    $region12: #{dimensional_reduction.1} parent=5 // pred_fallthru
      _
    %p199 = scmp.lt.s32.totalorder %s12, 2
    // Predicated region
    $region33: #{dimensional_reduction.1} parent=5 // pred_check
      %p200 = pneg %p199
    $region34: #{dimensional_reduction.1} parent=5 // pred_check_branch
      %202 = sbr.rel (%p200) target = $region36
    $region35: #{dimensional_reduction.1} parent=5 // pred_region
      // Predicated region
      $region37: #{dimensional_reduction.1} parent=35 // pred_check
        %p203 = pneg %p32
      $region38: #{dimensional_reduction.1} parent=35 // pred_check_branch
        %205 = sbr.rel (%p203) target = $region40
      $region39: #{dimensional_reduction.1} parent=35 // pred_region
        %p206 = scmp.lt.s32.totalorder %s12, 1
        %s207 = scalar_select %p206, %s12, 1
        %s208 = smul.addr %s207, 2
        %s209 = smul.addr %s208, 4
        %s210 = scalar_lea.vmem %s0, %s209
      $region40: #{dimensional_reduction.1} parent=35 // pred_fallthru
        _
    $region36: #{dimensional_reduction.1} parent=5 // pred_fallthru
      _
    %p211 = scmp.le.s32.totalorder 1, %s12
    %p212 = scmp.lt.s32.totalorder %s12, 3
    %p213 = pnand %p211, %p212
    %p214 = pneg %p213
    // Predicated region
    $region41: #{dimensional_reduction.1} parent=5 // pred_check
      _
    $region42: #{dimensional_reduction.1} parent=5 // pred_check_branch
      %216 = sbr.rel (%p213) target = $region44
    $region43: #{dimensional_reduction.1} parent=5 // pred_region
      %s217 = ssub.s32 %s12, 1
      %p218 = scmp.lt.s32.totalorder %s17, 1
      %s219 = scalar_select %p218, %s17, 1
      %s220 = smul.addr %s219, 2
      %s221 = smul.addr %s220, 4
      %s222 = scalar_lea.vmem %s0, %s221
      %p223 = pneg %p38
      %p224 = pneg %p35
      %p225 = pneg %p59
      %p226 = pneg %p56
      %p227 = pneg %p80
      %p228 = pneg %p77
      %p229 = pneg %p101
      %p230 = pneg %p98
      %p231 = pneg %p122
      %p232 = pneg %p119
      %p233 = pneg %p143
      %p234 = pneg %p140
      %p235 = pneg %p169
      %p236 = pneg %p166
      %p237 = scmp.lt.s32.totalorder %s17, 1
      %s238 = scalar_select %p237, %s17, 1
      %s239 = smul.addr %s238, 2
      %s240 = smul.addr %s239, 8
      %s241 = scalar_lea.vmem %s6, %s240
      %p242 = scmp.lt.s32.totalorder %s17, 1
      %s243 = scalar_select %p242, %s17, 1
      %s244 = smul.addr %s243, 2
      %s245 = smul.addr %s244, 4
      %s246 = scalar_lea.vmem %s0, %s245
      %p247 = scmp.lt.s32.totalorder %s17, 1
      %s248 = scalar_select %p247, %s17, 1
      %s249 = smul.addr %s248, 2
      %s250 = smul.addr %s249, 8
      %s251 = scalar_lea.vmem %s6, %s250
      %v252 = vld [vmem:[%s246] sm:$0xff]
      %v253 = vld [vmem:[%s5] sm:$0xff]
      %v254 = vld [vmem:[%s5 + $0x8] sm:$0xff]
      %v255 = vld [vmem:[%s5 + $0x10] sm:$0x1]
      %v256 = vld [vmem:[%s5 + $0x18] sm:$0x1]
      %v257 = vld [vmem:[%s1] sm:$0xff]
      %v258 = vld [vmem:[%s2] sm:$0xff]
      %v260 = vcombine.high %v252, %v252
      %262 = vrot.lane.b32.xlu0 %v252, 17
      %v263 = vpop.permute.xlu0 %262
      %264 = vrot.lane.b32.xlu0 %v260, 17
      %v265 = vpop.permute.xlu0 %264
      %v266 = vlaneseq
      %v267 = vand.u32 %v266, 127
      %vm268 = vcmp.lt.s32.totalorder %v267, 17
      %v269 = vsel %vm268, %v263, %v265
      %v270 = vsel %vm268, %v265, %v263
      %v271 = vlaneseq
      %v272 = vshrl.u32 %v271, 7
      %v273 = vsub.s32 0, %v272
      %v274 = vrot.slane %v253, %v273
      %v275 = vlaneseq
      %v276 = vshrl.u32 %v275, 7
      %v277 = vsub.s32 0, %v276
      %v278 = vrot.slane %v254, %v277
      %v279 = vmul.f32 %v270, %v274
      %v280 = vmul.f32 %v269, %v278
      %281 = vrot.lane.b32.xlu0 %v252, 16
      %v282 = vpop.permute.xlu0 %281
      %283 = vrot.lane.b32.xlu0 %v260, 16
      %v284 = vpop.permute.xlu0 %283
      %vm285 = vcmp.lt.s32.totalorder %v267, 16
      %v286 = vsel %vm285, %v282, %v284
      %v287 = vsel %vm285, %v284, %v282
      %v288 = vlaneseq
      %v289 = vshrl.u32 %v288, 7
      %v290 = vsub.s32 1, %v289
      %v291 = vrot.slane %v253, %v290
      %v292 = vlaneseq
      %v293 = vshrl.u32 %v292, 7
      %v294 = vsub.s32 1, %v293
      %v295 = vrot.slane %v254, %v294
      %v296 = vmul.f32 %v287, %v291
      %v297 = vmul.f32 %v286, %v295
      %298 = vrot.lane.b32.xlu0 %v252, 15
      %v299 = vpop.permute.xlu0 %298
      %300 = vrot.lane.b32.xlu0 %v260, 15
      %v301 = vpop.permute.xlu0 %300
      %vm302 = vcmp.lt.s32.totalorder %v267, 15
      %v303 = vsel %vm302, %v299, %v301
      %v304 = vsel %vm302, %v301, %v299
      %v305 = vlaneseq
      %v306 = vshrl.u32 %v305, 7
      %v307 = vsub.s32 2, %v306
      %v308 = vrot.slane %v253, %v307
      %v309 = vlaneseq
      %v310 = vshrl.u32 %v309, 7
      %v311 = vsub.s32 2, %v310
      %v312 = vrot.slane %v254, %v311
      %v313 = vmul.f32 %v304, %v308
      %v314 = vmul.f32 %v303, %v312
      %315 = vrot.lane.b32.xlu0 %v252, 1
      %v316 = vpop.permute.xlu0 %315
      %317 = vrot.lane.b32.xlu0 %v260, 1
      %v318 = vpop.permute.xlu0 %317
      %vm319 = vcmp.lt.s32.totalorder %v267, 1
      %v320 = vsel %vm319, %v316, %v318
      %v321 = vsel %vm319, %v318, %v316
      %v322 = vlaneseq
      %v323 = vshrl.u32 %v322, 7
      %v324 = vsub.s32 3, %v323
      %v325 = vrot.slane %v253, %v324
      %v326 = vlaneseq
      %v327 = vshrl.u32 %v326, 7
      %v328 = vsub.s32 3, %v327
      %v329 = vrot.slane %v254, %v328
      %v330 = vmul.f32 %v321, %v325
      %v331 = vmul.f32 %v320, %v329
      %332 = vrot.lane.b32.xlu0 %v252, 127
      %v333 = vpop.permute.xlu0 %332
      %334 = vrot.lane.b32.xlu0 %v260, 127
      %v335 = vpop.permute.xlu0 %334
      %vm336 = vcmp.lt.s32.totalorder %v267, 127
      %v337 = vsel %vm336, %v333, %v335
      %v338 = vsel %vm336, %v335, %v333
      %v339 = vlaneseq
      %v340 = vshrl.u32 %v339, 7
      %v341 = vsub.s32 5, %v340
      %v342 = vrot.slane %v253, %v341
      %v343 = vlaneseq
      %v344 = vshrl.u32 %v343, 7
      %v345 = vsub.s32 5, %v344
      %v346 = vrot.slane %v254, %v345
      %v347 = vmul.f32 %v337, %v342
      %v348 = vmul.f32 %v338, %v346
      %349 = vrot.lane.b32.xlu0 %v252, 113
      %v350 = vpop.permute.xlu0 %349
      %351 = vrot.lane.b32.xlu0 %v260, 113
      %v352 = vpop.permute.xlu0 %351
      %vm353 = vcmp.lt.s32.totalorder %v267, 113
      %v354 = vsel %vm353, %v350, %v352
      %v355 = vsel %vm353, %v352, %v350
      %v356 = vlaneseq
      %v357 = vshrl.u32 %v356, 7
      %v358 = vsub.s32 6, %v357
      %v359 = vrot.slane %v253, %v358
      %v360 = vlaneseq
      %v361 = vshrl.u32 %v360, 7
      %v362 = vsub.s32 6, %v361
      %v363 = vrot.slane %v254, %v362
      %v364 = vmul.f32 %v354, %v359
      %v365 = vmul.f32 %v355, %v363
      %366 = vrot.lane.b32.xlu0 %v252, 112
      %v367 = vpop.permute.xlu0 %366
      %368 = vrot.lane.b32.xlu0 %v260, 112
      %v369 = vpop.permute.xlu0 %368
      %vm370 = vcmp.lt.s32.totalorder %v267, 112
      %v371 = vsel %vm370, %v367, %v369
      %v372 = vsel %vm370, %v369, %v367
      %v373 = vlaneseq
      %v374 = vshrl.u32 %v373, 7
      %v375 = vsub.s32 7, %v374
      %v376 = vrot.slane %v253, %v375
      %v377 = vlaneseq
      %v378 = vshrl.u32 %v377, 7
      %v379 = vsub.s32 7, %v378
      %v380 = vrot.slane %v254, %v379
      %v381 = vmul.f32 %v371, %v376
      %v382 = vmul.f32 %v372, %v380
      %383 = vrot.lane.b32.xlu0 %v252, 111
      %v384 = vpop.permute.xlu0 %383
      %385 = vrot.lane.b32.xlu0 %v260, 111
      %v386 = vpop.permute.xlu0 %385
      %vm387 = vcmp.lt.s32.totalorder %v267, 111
      %v388 = vsel %vm387, %v384, %v386
      %v389 = vsel %vm387, %v386, %v384
      %v390 = vlaneseq
      %v391 = vshrl.u32 %v390, 7
      %v392 = vsub.s32 0, %v391
      %v393 = vrot.slane %v255, %v392
      %v394 = vlaneseq
      %v395 = vshrl.u32 %v394, 7
      %v396 = vsub.s32 0, %v395
      %v397 = vrot.slane %v256, %v396
      %v398 = vmul.f32 %v388, %v393
      %v399 = vmul.f32 %v389, %v397
      %v402 = vrot.slane %v296, 4
      %v403 = vrot.slane %v297, 4
      %v408 = vrot.slane %v330, 4
      %v409 = vrot.slane %v331, 4
      %v414 = vrot.slane %v347, 4
      %v415 = vrot.slane %v348, 4
      %v420 = vrot.slane %v381, 4
      %v421 = vrot.slane %v382, 4
      %vm424 = vcmask 1043456
      %v425 = vsel %vm424, %v279, %v402
      %v426 = vsel %vm424, %v280, %v403
      %v427 = vsel %vm424, %v313, %v408
      %v428 = vsel %vm424, %v314, %v409
      %v429 = vsel %vm424, %v252, %v414
      %v430 = vsel %vm424, %v260, %v415
      %v431 = vsel %vm424, %v364, %v420
      %v432 = vsel %vm424, %v365, %v421
      %434 = vset.pattern.permute.xlu0 0
      %435 = vperm.xlu0 %434, %v258
      %v436 = vpop.permute.xlu0 %435
      %vm438 = vcmask 293888
      %v440 = vsel %vm438, %v257, 0
      %v443 = vsel %vm424, %v398, 0
      %v446 = vsel %vm424, %v399, 0
      %448 = vmatprep.subr.mxu0 %v426
      %449 = vmatpush1.msra.mxu0 %v425
      %450 = vmatprep.subr.mxu0 %v428
      %451 = vmatpush1.msra.mxu0 %v427
      %452 = vmatprep.subr.mxu0 %v430
      %453 = vmatpush1.msra.mxu0 %v429
      %454 = vmatprep.subr.mxu0 %v432
      %455 = vmatpush1.msra.mxu0 %v431
      %456 = vmatprep.subr.mxu0 %v446
      %457 = vmatpush1.msra.mxu0 %v443
      %458 = vmatprep.subr.mxu0 0.0
      %459 = vmatpush1.msra.mxu0 0.0
      %460 = vmatprep.subr.mxu0 0.0
      %461 = vmatpush1.msra.mxu0 0.0
      %462 = vmatprep.subr.mxu0 0.0
      %463 = vmatpush1.msra.mxu0 0.0
      %464 = vmatprep.subr.mxu0 0.0
      %465 = vmatpush1.msra.mxu0 0.0
      %466 = vmatprep.subr.mxu0 0.0
      %467 = vmatpush1.msra.mxu0 0.0
      %468 = vmatprep.subr.mxu0 0.0
      %469 = vmatpush1.msra.mxu0 0.0
      %470 = vmatprep.subr.mxu0 0.0
      %471 = vmatpush1.msra.mxu0 0.0
      %472 = vmatprep.subr.mxu0 0.0
      %473 = vmatpush1.msra.mxu0 0.0
      %474 = vmatprep.subr.mxu0 0.0
      %475 = vmatpush1.msra.mxu0 0.0
      %476 = vmatprep.subr.mxu0 0.0
      %477 = vmatpush1.msra.mxu0 0.0
      %478 = vmatprep.subr.mxu0 0.0
      %479 = vmatpush1.msra.mxu0 0.0
      %480 = vmatprep.subr.mxu0 0.0
      %481 = vmatpush1.msra.mxu0 0.0
      %482 = vmatprep.subr.mxu0 0.0
      %483 = vmatpush1.msra.mxu0 0.0
      %484 = vmatprep.subr.mxu0 0.0
      %485 = vmatpush1.msra.mxu0 0.0
      %486 = vmatprep.subr.mxu0 0.0
      %487 = vmatpush1.msra.mxu0 0.0
      %488 = vmatprep.subr.mxu0 0.0
      %489 = vmatpush1.msra.mxu0 0.0
      %490 = vmatprep.subr.mxu0 0.0
      %491 = vmatpush1.msra.mxu0 0.0
      %492 = vmatprep.subr.mxu0 0.0
      %493 = vmatpush1.msra.mxu0 0.0
      %494 = vmatprep.subr.mxu0 0.0
      %495 = vmatpush1.msra.mxu0 0.0
      %496 = vmatprep.subr.mxu0 0.0
      %497 = vmatpush1.msra.mxu0 0.0
      %498 = vmatprep.subr.mxu0 0.0
      %499 = vmatpush1.msra.mxu0 0.0
      %500 = vmatprep.subr.mxu0 0.0
      %501 = vmatpush1.msra.mxu0 0.0
      %502 = vmatprep.subr.mxu0 0.0
      %503 = vmatpush1.msra.mxu0 0.0
      %504 = vmatprep.subr.mxu0 0.0
      %505 = vmatpush1.msra.mxu0 0.0
      %506 = vmatprep.subr.mxu0 0.0
      %507 = vmatpush1.msra.mxu0 0.0
      %508 = vmatprep.subr.mxu0 0.0
      %509 = vmatpush1.msra.mxu0 0.0
      %510 = vmatprep.subr.mxu0 0.0
      %511 = vmatpush1.msra.mxu0 0.0
      %512 = vmatprep.mubr.f32.mxu0 0.0
      %513 = vmatmul.mubr.f32.gmra.mrb[0].mxu0 %v440
      %v514 = vpop.f32.mrb[0].mxu0
      %v515 = vadd.f32 %v436, %v514
      %v516 = vpop.f32.mrb[0].mxu0
      %v517 = vadd.f32 %v436, %v516
      %518 = vdwg.mxu0
      %v519 = vmax.f32 %v515, 0.0
      %v520 = vmax.f32 %v517, 0.0
      %v521 = vld [vmem:[%s3] sm:$0xff]
      %v522 = vld [vmem:[%s4] sm:$0xff]
      %523 = vrot.lane.b32.xlu0 %v519, 17
      %v524 = vpop.permute.xlu0 %523
      %525 = vrot.lane.b32.xlu0 %v520, 17
      %v526 = vpop.permute.xlu0 %525
      %v527 = vsel %vm268, %v524, %v526
      %v528 = vsel %vm268, %v526, %v524
      %v529 = vmul.f32 %v528, %v274
      %v530 = vmul.f32 %v527, %v278
      %531 = vrot.lane.b32.xlu0 %v519, 16
      %v532 = vpop.permute.xlu0 %531
      %533 = vrot.lane.b32.xlu0 %v520, 16
      %v534 = vpop.permute.xlu0 %533
      %v535 = vsel %vm285, %v532, %v534
      %v536 = vsel %vm285, %v534, %v532
      %v537 = vmul.f32 %v536, %v291
      %v538 = vmul.f32 %v535, %v295
      %539 = vrot.lane.b32.xlu0 %v519, 15
      %v540 = vpop.permute.xlu0 %539
      %541 = vrot.lane.b32.xlu0 %v520, 15
      %v542 = vpop.permute.xlu0 %541
      %v543 = vsel %vm302, %v540, %v542
      %v544 = vsel %vm302, %v542, %v540
      %v545 = vmul.f32 %v544, %v308
      %v546 = vmul.f32 %v543, %v312
      %547 = vrot.lane.b32.xlu0 %v519, 1
      %v548 = vpop.permute.xlu0 %547
      %549 = vrot.lane.b32.xlu0 %v520, 1
      %v550 = vpop.permute.xlu0 %549
      %v551 = vsel %vm319, %v548, %v550
      %v552 = vsel %vm319, %v550, %v548
      %v553 = vmul.f32 %v552, %v325
      %v554 = vmul.f32 %v551, %v329
      %555 = vrot.lane.b32.xlu0 %v519, 127
      %v556 = vpop.permute.xlu0 %555
      %557 = vrot.lane.b32.xlu0 %v520, 127
      %v558 = vpop.permute.xlu0 %557
      %v559 = vsel %vm336, %v556, %v558
      %v560 = vsel %vm336, %v558, %v556
      %v561 = vmul.f32 %v559, %v342
      %v562 = vmul.f32 %v560, %v346
      %563 = vrot.lane.b32.xlu0 %v519, 113
      %v564 = vpop.permute.xlu0 %563
      %565 = vrot.lane.b32.xlu0 %v520, 113
      %v566 = vpop.permute.xlu0 %565
      %v567 = vsel %vm353, %v564, %v566
      %v568 = vsel %vm353, %v566, %v564
      %v569 = vmul.f32 %v567, %v359
      %v570 = vmul.f32 %v568, %v363
      %571 = vrot.lane.b32.xlu0 %v519, 112
      %v572 = vpop.permute.xlu0 %571
      %573 = vrot.lane.b32.xlu0 %v520, 112
      %v574 = vpop.permute.xlu0 %573
      %v575 = vsel %vm370, %v572, %v574
      %v576 = vsel %vm370, %v574, %v572
      %v577 = vmul.f32 %v575, %v376
      %v578 = vmul.f32 %v576, %v380
      %579 = vrot.lane.b32.xlu0 %v519, 111
      %v580 = vpop.permute.xlu0 %579
      %581 = vrot.lane.b32.xlu0 %v520, 111
      %v582 = vpop.permute.xlu0 %581
      %v583 = vsel %vm387, %v580, %v582
      %v584 = vsel %vm387, %v582, %v580
      %v585 = vmul.f32 %v583, %v393
      %v586 = vmul.f32 %v584, %v397
      %588 = vset.pattern.permute.xlu0 0
      %589 = vperm.xlu0 %588, %v522
      %v590 = vpop.permute.xlu0 %589
      %vm592 = vcmask 588800
      %v594 = vsel %vm592, %v521, 0
      %596 = vmatprep.subr.mxu0 %v530
      %597 = vmatpush1.msra.mxu0 %v529
      %598 = vmatprep.subr.mxu0 %v538
      %599 = vmatpush1.msra.mxu0 %v537
      %600 = vmatprep.subr.mxu0 %v546
      %601 = vmatpush1.msra.mxu0 %v545
      %602 = vmatprep.subr.mxu0 %v554
      %603 = vmatpush1.msra.mxu0 %v553
      %604 = vmatprep.subr.mxu0 %v520
      %605 = vmatpush1.msra.mxu0 %v519
      %606 = vmatprep.subr.mxu0 %v562
      %607 = vmatpush1.msra.mxu0 %v561
      %608 = vmatprep.subr.mxu0 %v570
      %609 = vmatpush1.msra.mxu0 %v569
      %610 = vmatprep.subr.mxu0 %v578
      %611 = vmatpush1.msra.mxu0 %v577
      %612 = vmatprep.subr.mxu0 %v586
      %613 = vmatpush1.msra.mxu0 %v585
      %614 = vmatprep.subr.mxu0 0.0
      %615 = vmatpush1.msra.mxu0 0.0
      %616 = vmatprep.subr.mxu0 0.0
      %617 = vmatpush1.msra.mxu0 0.0
      %618 = vmatprep.subr.mxu0 0.0
      %619 = vmatpush1.msra.mxu0 0.0
      %620 = vmatprep.subr.mxu0 0.0
      %621 = vmatpush1.msra.mxu0 0.0
      %622 = vmatprep.subr.mxu0 0.0
      %623 = vmatpush1.msra.mxu0 0.0
      %624 = vmatprep.subr.mxu0 0.0
      %625 = vmatpush1.msra.mxu0 0.0
      %626 = vmatprep.subr.mxu0 0.0
      %627 = vmatpush1.msra.mxu0 0.0
      %628 = vmatprep.subr.mxu0 0.0
      %629 = vmatpush1.msra.mxu0 0.0
      %630 = vmatprep.subr.mxu0 0.0
      %631 = vmatpush1.msra.mxu0 0.0
      %632 = vmatprep.subr.mxu0 0.0
      %633 = vmatpush1.msra.mxu0 0.0
      %634 = vmatprep.subr.mxu0 0.0
      %635 = vmatpush1.msra.mxu0 0.0
      %636 = vmatprep.subr.mxu0 0.0
      %637 = vmatpush1.msra.mxu0 0.0
      %638 = vmatprep.subr.mxu0 0.0
      %639 = vmatpush1.msra.mxu0 0.0
      %640 = vmatprep.subr.mxu0 0.0
      %641 = vmatpush1.msra.mxu0 0.0
      %642 = vmatprep.subr.mxu0 0.0
      %643 = vmatpush1.msra.mxu0 0.0
      %644 = vmatprep.subr.mxu0 0.0
      %645 = vmatpush1.msra.mxu0 0.0
      %646 = vmatprep.subr.mxu0 0.0
      %647 = vmatpush1.msra.mxu0 0.0
      %648 = vmatprep.subr.mxu0 0.0
      %649 = vmatpush1.msra.mxu0 0.0
      %650 = vmatprep.subr.mxu0 0.0
      %651 = vmatpush1.msra.mxu0 0.0
      %652 = vmatprep.subr.mxu0 0.0
      %653 = vmatpush1.msra.mxu0 0.0
      %654 = vmatprep.subr.mxu0 0.0
      %655 = vmatpush1.msra.mxu0 0.0
      %656 = vmatprep.subr.mxu0 0.0
      %657 = vmatpush1.msra.mxu0 0.0
      %658 = vmatprep.subr.mxu0 0.0
      %659 = vmatpush1.msra.mxu0 0.0
      %660 = vmatprep.mubr.f32.mxu0 0.0
      %661 = vmatmul.mubr.f32.gmra.mrb[0].mxu0 %v594
      %v662 = vpop.f32.mrb[0].mxu0
      %v663 = vadd.f32 %v590, %v662
      %v664 = vpop.f32.mrb[0].mxu0
      %v665 = vadd.f32 %v590, %v664
      %666 = vdwg.mxu0
      %v667 = vmax.f32 %v663, 0.0
      %v668 = vmax.f32 %v665, 0.0
      %669 = vst [vmem:[%s251] sm:$0xff] %v667
      %670 = vst [vmem:[%s251 + $0x8] sm:$0xff] %v668
      %p671 = scmp.lt.s32.totalorder %s17, 1
      %s672 = scalar_select %p671, %s17, 1
      %s673 = smul.addr %s672, 2
      %s674 = smul.addr %s673, 8
      %s675 = scalar_lea.vmem %s6, %s674
      // Predicated region
      $region45: #{dimensional_reduction.1} parent=43 // pred_check
        %p676 = pneg %p166
      $region46: #{dimensional_reduction.1} parent=43 // pred_check_branch
        %678 = sbr.rel (%p676) target = $region48
      $region47: #{dimensional_reduction.1} parent=43 // pred_region
        _
      $region48: #{dimensional_reduction.1} parent=43 // pred_fallthru
        _
    $region44: #{dimensional_reduction.1} parent=5 // pred_fallthru
      _
    %p679 = scmp.le.s32.totalorder 2, %s12
    // Predicated region
    $region49: #{dimensional_reduction.1} parent=5 // pred_check
      %p680 = pneg %p679
    $region50: #{dimensional_reduction.1} parent=5 // pred_check_branch
      %682 = sbr.rel (%p680) target = $region52
    $region51: #{dimensional_reduction.1} parent=5 // pred_region
      %s683 = ssub.s32 %s12, 2
      // Predicated region
      $region53: #{dimensional_reduction.1} parent=51 // pred_check
        %p684 = pneg %p172
      $region54: #{dimensional_reduction.1} parent=51 // pred_check_branch
        %686 = sbr.rel (%p684) target = $region56
      $region55: #{dimensional_reduction.1} parent=51 // pred_region
        %p687 = scmp.lt.s32.totalorder %s18, 1
        %s688 = scalar_select %p687, %s18, 1
        %s689 = smul.addr %s688, 2
        %s690 = smul.addr %s689, 8
        %s691 = scalar_lea.vmem %s6, %s690
      $region56: #{dimensional_reduction.1} parent=51 // pred_fallthru
        _
    $region52: #{dimensional_reduction.1} parent=5 // pred_fallthru
      _
  $region6: #{dimensional_reduction.1} parent=0 // loop_footer
    %s16 = sadd.s32 1, %s12
  $region7: #{dimensional_reduction.1} parent=0 // loop_footer_branch
    %11 = sbr.rel target = $region3
  $region8: #{dimensional_reduction.1} parent=0 // loop_exit
    _

</llo_original>
